<compile_context>
chip_gen: v7x
topology: tpu7x:2x2x1
jax: 0.10.0
libtpu: 0.0.40
codegen_flags: <defaults>
</compile_context>

<pallas_src>
import math
import jax
import jax.numpy as jnp
from jax.experimental import pallas as pl
from jax.experimental.pallas import tpu as pltpu


# --------------------------------------------------------------------------
# Shared gate math (runs on pooled (Bb, C) rows, all f32)
# --------------------------------------------------------------------------
def _gate_from_pools(avg, mx, w1_ref, b1_ref, w2_ref, b2_ref):
    # avg, mx : (Bb, C) f32
    bb = avg.shape[0]
    pooled = jnp.concatenate([avg, mx], axis=0)                    # (2Bb, C)
    # Linear1: pooled @ W1.T  (contract C with W1's dim 1, no transpose copy)
    h = jax.lax.dot_general(pooled, w1_ref[...],
                            (((1,), (1,)), ((), ())),
                            preferred_element_type=jnp.float32)     # (2Bb, hid)
    h = jnp.maximum(h + b1_ref[...], 0.0)                           # ReLU, b1 (1, hid)
    # Sum the avg- and max-branch activations BEFORE the second Linear.
    h_sum = h[:bb] + h[bb:]                                         # (Bb, hid)
    att = jax.lax.dot_general(h_sum, w2_ref[...],
                              (((1,), (1,)), ((), ())),
                              preferred_element_type=jnp.float32)   # (Bb, C)
    # bias b2 is counted once per pool branch in the PyTorch loop -> 2*b2.
    att = att + 2.0 * b2_ref[...]
    return jax.nn.sigmoid(att)                                      # (Bb, C) f32


# --------------------------------------------------------------------------
# Kernels
# --------------------------------------------------------------------------
def _channel_gate_kernel(x_ref, y_ref, w1_ref, b1_ref, w2_ref, b2_ref, o_ref):
    # x_ref / y_ref / o_ref : (Bb, C, HW)   spatial on lanes, channels on sublanes
    # w1_ref: (hid, C)  b1_ref: (1, hid)    (PyTorch Linear #1 layout)
    # w2_ref: (C, hid)  b2_ref: (1, C)      (PyTorch Linear #2 layout)
    x = x_ref[...]
    inv_hw = 1.0 / x.shape[-1]
    avg = jnp.sum(x, axis=-1, dtype=jnp.float32) * inv_hw           # (Bb, C) f32 accum
    mx = jnp.max(x, axis=-1).astype(jnp.float32)                    # (Bb, C)
    scale = _gate_from_pools(avg, mx, w1_ref, b1_ref, w2_ref, b2_ref)
    y = y_ref[...].astype(jnp.float32)
    o_ref[...] = (y * scale[:, :, None]).astype(o_ref.dtype)


def _channel_gate_self_kernel(x_ref, w1_ref, b1_ref, w2_ref, b2_ref, o_ref):
    # Fast path for y is x: stream the feature map once, reuse for pool+scale.
    x = x_ref[...].astype(jnp.float32)
    inv_hw = 1.0 / x.shape[-1]
    avg = jnp.sum(x, axis=-1) * inv_hw                              # (Bb, C)
    mx = jnp.max(x, axis=-1)                                        # (Bb, C)
    scale = _gate_from_pools(avg, mx, w1_ref, b1_ref, w2_ref, b2_ref)
    o_ref[...] = (x * scale[:, :, None]).astype(o_ref.dtype)


# --------------------------------------------------------------------------
# Block-size heuristic
# --------------------------------------------------------------------------
def _choose_batch_block(batch, per_batch_bytes, *, target_bytes=4 << 20, min_steps=8):
    """Pick Bb: blocks ~2-4 MiB, >=min_steps grid steps when batch allows it,
    and Bb divides batch (no partial trailing block)."""
    bb = max(1, min(batch, target_bytes // max(per_batch_bytes, 1)))
    # keep enough grid steps for pipelining / both v7x TensorCores,
    # as long as blocks stay >= ~1 MiB
    while bb > 1 and -(-batch // bb) < min_steps and bb * per_batch_bytes > (1 << 20):
        bb = max(1, bb // 2)
    while batch % bb != 0:
        bb -= 1
    return bb


# --------------------------------------------------------------------------
# Pallas wrapper
# --------------------------------------------------------------------------
def channel_gate_forward(x_nchw, y_nchw, p):
    """ChannelGate.forward(x, y) with pool_types=['avg','max']. NCHW in/out."""
    B, C, H, W = x_nchw.shape
    HW = H * W
    hidden = p["w1"].shape[0]

    itemsize = x_nchw.dtype.itemsize
    per_batch_bytes = C * HW * itemsize
    Bb = _choose_batch_block(B, per_batch_bytes)
    steps = pl.cdiv(B, Bb)
    block_bytes = Bb * per_batch_bytes

    same_input = x_nchw is y_nchw
    n_streams = 2 if same_input else 3  # HBM-streamed (B,C,HW) tensors (in/out)
    weight_bytes = 4 * (hidden * C + hidden + C * hidden + C)
    need = 2 * n_streams * block_bytes + 2 * weight_bytes + (4 << 20)
    vmem_limit = int(min(56 << 20, max(32 << 20, need)))  # v7x-safe cap

    # Free bitcast for contiguous NCHW tensors (no HBM pass).
    x2 = x_nchw.reshape(B, C, HW)

    feat_spec = pl.BlockSpec((Bb, C, HW), lambda b: (b, 0, 0))
    w_specs = [
        pl.BlockSpec((hidden, C), lambda b: (0, 0)),   # W1 (hid, C)
        pl.BlockSpec((1, hidden), lambda b: (0, 0)),   # b1 (1, hid)
        pl.BlockSpec((C, hidden), lambda b: (0, 0)),   # W2 (C, hid)
        pl.BlockSpec((1, C), lambda b: (0, 0)),        # b2 (1, C)
    ]
    cparams = pltpu.CompilerParams(
        dimension_semantics=("parallel",),
        vmem_limit_bytes=vmem_limit,
    )

    if same_input:
        out = pl.pallas_call(
            _channel_gate_self_kernel,
            out_shape=jax.ShapeDtypeStruct((B, C, HW), y_nchw.dtype),
            grid=(steps,),
            in_specs=[feat_spec] + w_specs,
            out_specs=feat_spec,
            compiler_params=cparams,
        )(x2, p["w1"], p["b1_row"], p["w2"], p["b2_row"])
    else:
        y2 = y_nchw.reshape(B, C, HW)
        out = pl.pallas_call(
            _channel_gate_kernel,
            out_shape=jax.ShapeDtypeStruct((B, C, HW), y_nchw.dtype),
            grid=(steps,),
            in_specs=[feat_spec, feat_spec] + w_specs,
            out_specs=feat_spec,
            compiler_params=cparams,
        )(x2, y2, p["w1"], p["b1_row"], p["w2"], p["b2_row"])

    return out.reshape(B, C, H, W)


# --------------------------------------------------------------------------
# Deterministic synthetic parameters (PyTorch layouts)
# --------------------------------------------------------------------------
def make_params(key, gate_channels, reduction_ratio):
    hidden = max(gate_channels // reduction_ratio, 1)
    k1, k2, k3, k4 = jax.random.split(key, 4)

    def n(k, shape, scale):
        return jax.random.normal(k, shape, jnp.float32) * scale

    w1 = n(k1, (hidden, gate_channels), 1.0 / math.sqrt(gate_channels))  # Linear1.weight
    b1 = n(k2, (hidden,), 0.1)                                           # Linear1.bias
    w2 = n(k3, (gate_channels, hidden), 1.0 / math.sqrt(hidden))         # Linear2.weight
    b2 = n(k4, (gate_channels,), 0.1)                                    # Linear2.bias

    return {
        "w1": w1, "b1": b1, "w2": w2, "b2": b2,
        # kernel-format 2-D row biases (broadcast over pooled rows)
        "b1_row": b1.reshape(1, hidden),
        "b2_row": b2.reshape(1, gate_channels),
    }


# --------------------------------------------------------------------------
# Pure-JAX reference (PyTorch semantics, pool_types=['avg','max'])
# --------------------------------------------------------------------------
def ref_forward(x, y, p):
    avg = jnp.mean(x, axis=(2, 3))                    # F.avg_pool2d over full HxW
    mx = jnp.max(x, axis=(2, 3))                      # F.max_pool2d over full HxW

    def mlp(v):                                       # Flatten -> Linear -> ReLU -> Linear
        h = jnp.maximum(v @ p["w1"].T + p["b1"], 0.0)
        return h @ p["w2"].T + p["b2"]

    att = mlp(avg) + mlp(mx)
    scale = jax.nn.sigmoid(att)                       # (B, C)
    return y * scale[:, :, None, None]


# --------------------------------------------------------------------------
if __name__ == "__main__":
    key = jax.random.PRNGKey(0)
    B, C, H, W = 2, 64, 16, 16
    reduction_ratio = 16

    kx, ky, kp = jax.random.split(key, 3)
    x = jax.random.normal(kx, (B, C, H, W), jnp.float32)
    y = jax.random.normal(ky, (B, C, H, W), jnp.float32)
    params = make_params(kp, C, reduction_ratio)

    # Two-input path (module signature: forward(x, y)).
    out = jax.block_until_ready(channel_gate_forward(x, y, params))
    ref = jax.block_until_ready(ref_forward(x, y, params))
    assert out.shape == (B, C, H, W), out.shape
    err = float(jnp.max(jnp.abs(out - ref)))
    if not jnp.allclose(out, ref, atol=1e-4, rtol=1e-4):
        raise AssertionError(f"Pallas (x,y) result mismatch vs reference, max abs err = {err}")

    # Single-input fast path (standard CBAM usage: out = x * gate(x)).
    out_self = jax.block_until_ready(channel_gate_forward(x, x, params))
    ref_self = jax.block_until_ready(ref_forward(x, x, params))
    err_self = float(jnp.max(jnp.abs(out_self - ref_self)))
    if not jnp.allclose(out_self, ref_self, atol=1e-4, rtol=1e-4):
        raise AssertionError(f"Pallas (x,x) result mismatch vs reference, max abs err = {err_self}")

    print("KERNEL_OK")
</pallas_src>

<mosaic_0001>
module attributes {stable_mosaic.version = 11 : i64} {
  func.func @_channel_gate_kernel(%arg0: i32, %arg1: memref<2x64x256xf32, #tpu.memory_space<vmem>>, %arg2: memref<2x64x256xf32, #tpu.memory_space<vmem>>, %arg3: memref<4x64xf32, #tpu.memory_space<vmem>>, %arg4: memref<1x4xf32, #tpu.memory_space<vmem>>, %arg5: memref<64x4xf32, #tpu.memory_space<vmem>>, %arg6: memref<1x64xf32, #tpu.memory_space<vmem>>, %arg7: memref<2x64x256xf32, #tpu.memory_space<vmem>>) attributes {dimension_semantics = [#tpu.dimension_semantics<parallel>], iteration_bounds = array<i64: 1>, scalar_prefetch = 0 : i64, scratch_operands = 0 : i64, tpu.core_type = #tpu.core_type<tc>, window_params = [{transform_indices = @transform_0, window_bounds = array<i64: 2, 64, 256>}, {transform_indices = @transform_1, window_bounds = array<i64: 2, 64, 256>}, {pipeline_mode = #tpu.pipeline_mode<synchronous>, transform_indices = @transform_2, window_bounds = array<i64: 4, 64>}, {pipeline_mode = #tpu.pipeline_mode<synchronous>, transform_indices = @transform_3, window_bounds = array<i64: 1, 4>}, {pipeline_mode = #tpu.pipeline_mode<synchronous>, transform_indices = @transform_4, window_bounds = array<i64: 64, 4>}, {pipeline_mode = #tpu.pipeline_mode<synchronous>, transform_indices = @transform_5, window_bounds = array<i64: 1, 64>}, {transform_indices = @transform_6, window_bounds = array<i64: 2, 64, 256>}]} {
    %c0 = arith.constant 0 : index
    %c0_0 = arith.constant 0 : index
    %c0_1 = arith.constant 0 : index
    %0 = vector.load %arg1[%c0, %c0_0, %c0_1] : memref<2x64x256xf32, #tpu.memory_space<vmem>>, vector<2x64x256xf32>
    %cst = arith.constant dense<0.000000e+00> : vector<2x64xf32>
    %1 = vector.multi_reduction <add>, %0, %cst [2] : vector<2x64x256xf32> to vector<2x64xf32>
    %cst_2 = arith.constant 3.906250e-03 : f32
    %2 = vector.broadcast %cst_2 : f32 to vector<2x64xf32>
    %3 = arith.mulf %1, %2 : vector<2x64xf32>
    %cst_3 = arith.constant dense<0xFF800000> : vector<2x64xf32>
    %4 = vector.multi_reduction <maximumf>, %0, %cst_3 [2] : vector<2x64x256xf32> to vector<2x64xf32>
    %5 = tpu.concatenate %3, %4 in 0 : vector<2x64xf32>, vector<2x64xf32> -> vector<4x64xf32>
    %c0_4 = arith.constant 0 : index
    %c0_5 = arith.constant 0 : index
    %6 = vector.load %arg3[%c0_4, %c0_5] : memref<4x64xf32, #tpu.memory_space<vmem>>, vector<4x64xf32>
    %cst_6 = arith.constant dense<0.000000e+00> : vector<4x4xf32>
    %7 = tpu.matmul %5, %6, %cst_6 {dimension_numbers = #tpu.dot_dimension_numbers<[1], [1], [0], [0], [0, 0, 1, 0], [], []>} : vector<4x64xf32>, vector<4x64xf32>, vector<4x4xf32> -> vector<4x4xf32>
    %c0_7 = arith.constant 0 : index
    %c0_8 = arith.constant 0 : index
    %8 = vector.load %arg4[%c0_7, %c0_8] : memref<1x4xf32, #tpu.memory_space<vmem>>, vector<1x4xf32>
    %9 = vector.broadcast %8 : vector<1x4xf32> to vector<4x4xf32>
    %10 = arith.addf %7, %9 : vector<4x4xf32>
    %cst_9 = arith.constant 0.000000e+00 : f32
    %11 = vector.broadcast %cst_9 : f32 to vector<4x4xf32>
    %12 = arith.maximumf %10, %11 : vector<4x4xf32>
    %13 = vector.extract_strided_slice %12 {offsets = [0, 0], sizes = [2, 4], strides = [1, 1]} : vector<4x4xf32> to vector<2x4xf32>
    %14 = vector.extract_strided_slice %12 {offsets = [2, 0], sizes = [2, 4], strides = [1, 1]} : vector<4x4xf32> to vector<2x4xf32>
    %15 = arith.addf %13, %14 : vector<2x4xf32>
    %c0_10 = arith.constant 0 : index
    %c0_11 = arith.constant 0 : index
    %16 = vector.load %arg5[%c0_10, %c0_11] : memref<64x4xf32, #tpu.memory_space<vmem>>, vector<64x4xf32>
    %cst_12 = arith.constant dense<0.000000e+00> : vector<2x64xf32>
    %17 = tpu.matmul %15, %16, %cst_12 {dimension_numbers = #tpu.dot_dimension_numbers<[1], [1], [0], [0], [0, 0, 1, 0], [], []>} : vector<2x4xf32>, vector<64x4xf32>, vector<2x64xf32> -> vector<2x64xf32>
    %c0_13 = arith.constant 0 : index
    %c0_14 = arith.constant 0 : index
    %18 = vector.load %arg6[%c0_13, %c0_14] : memref<1x64xf32, #tpu.memory_space<vmem>>, vector<1x64xf32>
    %cst_15 = arith.constant 2.000000e+00 : f32
    %19 = vector.broadcast %cst_15 : f32 to vector<1x64xf32>
    %20 = arith.mulf %19, %18 : vector<1x64xf32>
    %21 = vector.broadcast %20 : vector<1x64xf32> to vector<2x64xf32>
    %22 = arith.addf %17, %21 : vector<2x64xf32>
    %23 = arith.negf %22 : vector<2x64xf32>
    %24 = math.exp %23 : vector<2x64xf32>
    %cst_16 = arith.constant 1.000000e+00 : f32
    %25 = vector.broadcast %cst_16 : f32 to vector<2x64xf32>
    %26 = arith.addf %25, %24 : vector<2x64xf32>
    %27 = arith.divf %25, %26 : vector<2x64xf32>
    %c0_17 = arith.constant 0 : index
    %c0_18 = arith.constant 0 : index
    %c0_19 = arith.constant 0 : index
    %28 = vector.load %arg2[%c0_17, %c0_18, %c0_19] : memref<2x64x256xf32, #tpu.memory_space<vmem>>, vector<2x64x256xf32>
    %29 = vector.shape_cast %27 : vector<2x64xf32> to vector<2x64x1xf32>
    %30 = vector.broadcast %29 : vector<2x64x1xf32> to vector<2x64x256xf32>
    %31 = arith.mulf %28, %30 : vector<2x64x256xf32>
    %c0_20 = arith.constant 0 : index
    %c0_21 = arith.constant 0 : index
    %c0_22 = arith.constant 0 : index
    %32 = vector.load %arg7[%c0_20, %c0_21, %c0_22] : memref<2x64x256xf32, #tpu.memory_space<vmem>>, vector<2x64x256xf32>
    tpu.vector_store %arg7[%c0_20, %c0_21, %c0_22], %31 {strides = array<i32>} : memref<2x64x256xf32, #tpu.memory_space<vmem>>, vector<2x64x256xf32>,
    return
  }
  func.func @transform_0(%arg0: i32) -> (i32, i32, i32) {
    %c0_i32 = arith.constant 0 : i32
    %c0_i32_0 = arith.constant 0 : i32
    %c0_i32_1 = arith.constant 0 : i32
    return %arg0, %c0_i32, %c0_i32_0 : i32, i32, i32
  }
  func.func @transform_1(%arg0: i32) -> (i32, i32, i32) {
    %c0_i32 = arith.constant 0 : i32
    %c0_i32_0 = arith.constant 0 : i32
    %c0_i32_1 = arith.constant 0 : i32
    return %arg0, %c0_i32, %c0_i32_0 : i32, i32, i32
  }
  func.func @transform_2(%arg0: i32) -> (i32, i32) {
    %c0_i32 = arith.constant 0 : i32
    %c0_i32_0 = arith.constant 0 : i32
    %c0_i32_1 = arith.constant 0 : i32
    return %c0_i32, %c0_i32_0 : i32, i32
  }
  func.func @transform_3(%arg0: i32) -> (i32, i32) {
    %c0_i32 = arith.constant 0 : i32
    %c0_i32_0 = arith.constant 0 : i32
    %c0_i32_1 = arith.constant 0 : i32
    return %c0_i32, %c0_i32_0 : i32, i32
  }
  func.func @transform_4(%arg0: i32) -> (i32, i32) {
    %c0_i32 = arith.constant 0 : i32
    %c0_i32_0 = arith.constant 0 : i32
    %c0_i32_1 = arith.constant 0 : i32
    return %c0_i32, %c0_i32_0 : i32, i32
  }
  func.func @transform_5(%arg0: i32) -> (i32, i32) {
    %c0_i32 = arith.constant 0 : i32
    %c0_i32_0 = arith.constant 0 : i32
    %c0_i32_1 = arith.constant 0 : i32
    return %c0_i32, %c0_i32_0 : i32, i32
  }
  func.func @transform_6(%arg0: i32) -> (i32, i32, i32) {
    %c0_i32 = arith.constant 0 : i32
    %c0_i32_0 = arith.constant 0 : i32
    %c0_i32_1 = arith.constant 0 : i32
    return %arg0, %c0_i32, %c0_i32_0 : i32, i32, i32
  }
}

</mosaic_0001>

<llo_original>
// kernel: tpu_custom_call.1
$region0: #{tpu_custom_call.1}
  #allocation0 [shape = 'u32[]', space=smem, size = 0x4, offset = 0x4, fixed_abs, tag = 'smem constant byte address 0x4 - core index']
  #allocation1 [shape = 'u32[144,128]{1,0:T(1,128)}', space=vmem, size = 0x12000, scoped, tag = 'internal scratch']
  %s0 = inlined_call_operand.hbm [shape: f32[2,64,256], index: 0, kind: input, shape index: {}]
  %s1 = inlined_call_operand.hbm [shape: f32[2,64,256], index: 1, kind: input, shape index: {}]
  %s2 = inlined_call_operand.vmem [shape: f32[4,64], index: 2, kind: input, shape index: {}]
  %s3 = inlined_call_operand.vmem [shape: f32[1,4], index: 3, kind: input, shape index: {}]
  %s4 = inlined_call_operand.vmem [shape: f32[64,4], index: 4, kind: input, shape index: {}]
  %s5 = inlined_call_operand.vmem [shape: f32[1,64], index: 5, kind: input, shape index: {}]
  %s6 = inlined_call_operand.hbm [shape: f32[2,64,256], index: 6, kind: output, shape index: {}]
  %s7 = sld [smem:[#allocation0]]
  $region42: #{tpu_custom_call.1} parent=0
    _
  %s9 = ssub.s32 1, %s7
  %s10 = scalar_select 0, %s9, %s7
  $region1: #{tpu_custom_call.1} parent=0
    #allocation2 [shape = 'u8[131072]{0}', space=vmem, size = 0x20000, scoped, tag = 'input window, operand 0, single buffered']
    #allocation3 [shape = 's32[1]{0}', space=sflag, size = 0x4, scoped, tag = 'scoped memory for tpu_custom_call.1']
    #allocation4 [shape = 's32[1]{0}', space=sflag, size = 0x4, scoped, tag = 'scoped memory for tpu_custom_call.1']
    #allocation5 [shape = 'u8[131072]{0}', space=vmem, size = 0x20000, scoped, tag = 'input window, operand 1, single buffered']
    #allocation6 [shape = 's32[1]{0}', space=sflag, size = 0x4, scoped, tag = 'scoped memory for tpu_custom_call.1']
    #allocation7 [shape = 'u8[131072]{0}', space=vmem, size = 0x20000, scoped, tag = 'output window, operand 0, single buffered']
    %11 = vsyncpa [#allocation3], 0
    %12 = vsyncpa [#allocation6], 0
    %13 = vsyncpa [#allocation4], 0
    // Predicated region
    $region2: #{tpu_custom_call.1} parent=1 // pred_check
      _
    $region3: #{tpu_custom_call.1} parent=1 // pred_check_branch
      %15 = sbr.rel (0) target = $region5
    $region4: #{tpu_custom_call.1} parent=1 // pred_region
      %s17 = ssub.s32 4096, 4096
      %18 = vsyncadd [#allocation3], %s17
      %s19 = sshll.u32 [#allocation2], 4
      %s20 = int_to_ptr.vmem [resolvable:$true] %s19
      %25 = dma.hbm_to_vmem [thread:$0]  %s0, 4096, %s20, [#allocation3], 256, 256, 16
    $region5: #{tpu_custom_call.1} parent=1 // pred_fallthru
      _
    // Predicated region
    $region6: #{tpu_custom_call.1} parent=1 // pred_check
      _
    $region7: #{tpu_custom_call.1} parent=1 // pred_check_branch
      %27 = sbr.rel (0) target = $region9
    $region8: #{tpu_custom_call.1} parent=1 // pred_region
      %s29 = ssub.s32 4096, 4096
      %30 = vsyncadd [#allocation6], %s29
      %s31 = sshll.u32 [#allocation5], 4
      %s32 = int_to_ptr.vmem [resolvable:$true] %s31
      %37 = dma.hbm_to_vmem [thread:$0]  %s1, 4096, %s32, [#allocation6], 256, 256, 16
    $region9: #{tpu_custom_call.1} parent=1 // pred_fallthru
      _
    // Predicated region
    $region10: #{tpu_custom_call.1} parent=1 // pred_check
      _
    $region11: #{tpu_custom_call.1} parent=1 // pred_check_branch
      %39 = sbr.rel (0) target = $region13
    $region12: #{tpu_custom_call.1} parent=1 // pred_region
      _
    $region13: #{tpu_custom_call.1} parent=1 // pred_fallthru
      _
    // Predicated region
    $region14: #{tpu_custom_call.1} parent=1 // pred_check
      _
    $region15: #{tpu_custom_call.1} parent=1 // pred_check_branch
      %41 = sbr.rel (0) target = $region17
    $region16: #{tpu_custom_call.1} parent=1 // pred_region
      _
    $region17: #{tpu_custom_call.1} parent=1 // pred_fallthru
      _
    // Predicated region
    $region18: #{tpu_custom_call.1} parent=1 // pred_check
      _
    $region19: #{tpu_custom_call.1} parent=1 // pred_check_branch
      %43 = sbr.rel (0) target = $region21
    $region20: #{tpu_custom_call.1} parent=1 // pred_region
      _
    $region21: #{tpu_custom_call.1} parent=1 // pred_fallthru
      _
    // Predicated region
    $region22: #{tpu_custom_call.1} parent=1 // pred_check
      _
    $region23: #{tpu_custom_call.1} parent=1 // pred_check_branch
      %45 = sbr.rel (0) target = $region25
    $region24: #{tpu_custom_call.1} parent=1 // pred_region
      _
    $region25: #{tpu_custom_call.1} parent=1 // pred_fallthru
      _
    // Predicated region
    $region26: #{tpu_custom_call.1} parent=1 // pred_check
      _
    $region27: #{tpu_custom_call.1} parent=1 // pred_check_branch
      %47 = sbr.rel (0) target = $region29
    $region28: #{tpu_custom_call.1} parent=1 // pred_region
      %48 = dma.done [#allocation3], 4096
    $region29: #{tpu_custom_call.1} parent=1 // pred_fallthru
      _
    // Predicated region
    $region30: #{tpu_custom_call.1} parent=1 // pred_check
      _
    $region31: #{tpu_custom_call.1} parent=1 // pred_check_branch
      %50 = sbr.rel (0) target = $region33
    $region32: #{tpu_custom_call.1} parent=1 // pred_region
      %51 = dma.done [#allocation6], 4096
    $region33: #{tpu_custom_call.1} parent=1 // pred_fallthru
      _
    %v52 = vld [vmem:[#allocation2] sm:$0xff]
    %v53 = vld [vmem:[#allocation2 + $0x8] sm:$0xff]
    %v54 = vld [vmem:[#allocation2 + $0x10] sm:$0xff]
    %v55 = vld [vmem:[#allocation2 + $0x18] sm:$0xff]
    %v56 = vld [vmem:[#allocation2 + $0x20] sm:$0xff]
    %v57 = vld [vmem:[#allocation2 + $0x28] sm:$0xff]
    %v58 = vld [vmem:[#allocation2 + $0x30] sm:$0xff]
    %v59 = vld [vmem:[#allocation2 + $0x38] sm:$0xff]
    %v60 = vld [vmem:[#allocation2 + $0x40] sm:$0xff]
    %v61 = vld [vmem:[#allocation2 + $0x48] sm:$0xff]
    %v62 = vld [vmem:[#allocation2 + $0x50] sm:$0xff]
    %v63 = vld [vmem:[#allocation2 + $0x58] sm:$0xff]
    %v64 = vld [vmem:[#allocation2 + $0x60] sm:$0xff]
    %v65 = vld [vmem:[#allocation2 + $0x68] sm:$0xff]
    %v66 = vld [vmem:[#allocation2 + $0x70] sm:$0xff]
    %v67 = vld [vmem:[#allocation2 + $0x78] sm:$0xff]
    %v68 = vld [vmem:[#allocation2 + $0x80] sm:$0xff]
    %v69 = vld [vmem:[#allocation2 + $0x88] sm:$0xff]
    %v70 = vld [vmem:[#allocation2 + $0x90] sm:$0xff]
    %v71 = vld [vmem:[#allocation2 + $0x98] sm:$0xff]
    %v72 = vld [vmem:[#allocation2 + $0xa0] sm:$0xff]
    %v73 = vld [vmem:[#allocation2 + $0xa8] sm:$0xff]
    %v74 = vld [vmem:[#allocation2 + $0xb0] sm:$0xff]
    %v75 = vld [vmem:[#allocation2 + $0xb8] sm:$0xff]
    %v76 = vld [vmem:[#allocation2 + $0xc0] sm:$0xff]
    %v77 = vld [vmem:[#allocation2 + $0xc8] sm:$0xff]
    %v78 = vld [vmem:[#allocation2 + $0xd0] sm:$0xff]
    %v79 = vld [vmem:[#allocation2 + $0xd8] sm:$0xff]
    %v80 = vld [vmem:[#allocation2 + $0xe0] sm:$0xff]
    %v81 = vld [vmem:[#allocation2 + $0xe8] sm:$0xff]
    %v82 = vld [vmem:[#allocation2 + $0xf0] sm:$0xff]
    %v83 = vld [vmem:[#allocation2 + $0xf8] sm:$0xff]
    %v84 = vadd.f32 %v52, %v53
    %85 = vadd.xlane.f32.xlu0 %v84
    %v86 = vpop.xlane.xlu0 %85
    %v87 = vadd.f32 %v54, %v55
    %88 = vadd.xlane.f32.xlu0 %v87
    %v89 = vpop.xlane.xlu0 %88
    %v90 = vadd.f32 %v56, %v57
    %91 = vadd.xlane.f32.xlu0 %v90
    %v92 = vpop.xlane.xlu0 %91
    %v93 = vadd.f32 %v58, %v59
    %94 = vadd.xlane.f32.xlu0 %v93
    %v95 = vpop.xlane.xlu0 %94
    %v96 = vadd.f32 %v60, %v61
    %97 = vadd.xlane.f32.xlu0 %v96
    %v98 = vpop.xlane.xlu0 %97
    %v99 = vadd.f32 %v62, %v63
    %100 = vadd.xlane.f32.xlu0 %v99
    %v101 = vpop.xlane.xlu0 %100
    %v102 = vadd.f32 %v64, %v65
    %103 = vadd.xlane.f32.xlu0 %v102
    %v104 = vpop.xlane.xlu0 %103
    %v105 = vadd.f32 %v66, %v67
    %106 = vadd.xlane.f32.xlu0 %v105
    %v107 = vpop.xlane.xlu0 %106
    %v108 = vadd.f32 %v68, %v69
    %109 = vadd.xlane.f32.xlu0 %v108
    %v110 = vpop.xlane.xlu0 %109
    %v111 = vadd.f32 %v70, %v71
    %112 = vadd.xlane.f32.xlu0 %v111
    %v113 = vpop.xlane.xlu0 %112
    %v114 = vadd.f32 %v72, %v73
    %115 = vadd.xlane.f32.xlu0 %v114
    %v116 = vpop.xlane.xlu0 %115
    %v117 = vadd.f32 %v74, %v75
    %118 = vadd.xlane.f32.xlu0 %v117
    %v119 = vpop.xlane.xlu0 %118
    %v120 = vadd.f32 %v76, %v77
    %121 = vadd.xlane.f32.xlu0 %v120
    %v122 = vpop.xlane.xlu0 %121
    %v123 = vadd.f32 %v78, %v79
    %124 = vadd.xlane.f32.xlu0 %v123
    %v125 = vpop.xlane.xlu0 %124
    %v126 = vadd.f32 %v80, %v81
    %127 = vadd.xlane.f32.xlu0 %v126
    %v128 = vpop.xlane.xlu0 %127
    %v129 = vadd.f32 %v82, %v83
    %130 = vadd.xlane.f32.xlu0 %v129
    %v131 = vpop.xlane.xlu0 %130
    %v132 = vmul.f32 %v86, 0.00390625
    %v133 = vmul.f32 %v89, 0.00390625
    %v134 = vmul.f32 %v92, 0.00390625
    %v135 = vmul.f32 %v95, 0.00390625
    %v136 = vmul.f32 %v98, 0.00390625
    %v137 = vmul.f32 %v101, 0.00390625
    %v138 = vmul.f32 %v104, 0.00390625
    %v139 = vmul.f32 %v107, 0.00390625
    %v140 = vmul.f32 %v110, 0.00390625
    %v141 = vmul.f32 %v113, 0.00390625
    %v142 = vmul.f32 %v116, 0.00390625
    %v143 = vmul.f32 %v119, 0.00390625
    %v144 = vmul.f32 %v122, 0.00390625
    %v145 = vmul.f32 %v125, 0.00390625
    %v146 = vmul.f32 %v128, 0.00390625
    %v147 = vmul.f32 %v131, 0.00390625
    %v148 = vmax.f32 %v52, %v53
    %149 = vmax.xlane.f32.xlu0 %v148
    %v150 = vpop.xlane.xlu0 %149
    %v151 = vmax.f32 %v54, %v55
    %152 = vmax.xlane.f32.xlu0 %v151
    %v153 = vpop.xlane.xlu0 %152
    %v154 = vmax.f32 %v56, %v57
    %155 = vmax.xlane.f32.xlu0 %v154
    %v156 = vpop.xlane.xlu0 %155
    %v157 = vmax.f32 %v58, %v59
    %158 = vmax.xlane.f32.xlu0 %v157
    %v159 = vpop.xlane.xlu0 %158
    %v160 = vmax.f32 %v60, %v61
    %161 = vmax.xlane.f32.xlu0 %v160
    %v162 = vpop.xlane.xlu0 %161
    %v163 = vmax.f32 %v62, %v63
    %164 = vmax.xlane.f32.xlu0 %v163
    %v165 = vpop.xlane.xlu0 %164
    %v166 = vmax.f32 %v64, %v65
    %167 = vmax.xlane.f32.xlu0 %v166
    %v168 = vpop.xlane.xlu0 %167
    %v169 = vmax.f32 %v66, %v67
    %170 = vmax.xlane.f32.xlu0 %v169
    %v171 = vpop.xlane.xlu0 %170
    %v172 = vmax.f32 %v68, %v69
    %173 = vmax.xlane.f32.xlu0 %v172
    %v174 = vpop.xlane.xlu0 %173
    %v175 = vmax.f32 %v70, %v71
    %176 = vmax.xlane.f32.xlu0 %v175
    %v177 = vpop.xlane.xlu0 %176
    %v178 = vmax.f32 %v72, %v73
    %179 = vmax.xlane.f32.xlu0 %v178
    %v180 = vpop.xlane.xlu0 %179
    %v181 = vmax.f32 %v74, %v75
    %182 = vmax.xlane.f32.xlu0 %v181
    %v183 = vpop.xlane.xlu0 %182
    %v184 = vmax.f32 %v76, %v77
    %185 = vmax.xlane.f32.xlu0 %v184
    %v186 = vpop.xlane.xlu0 %185
    %v187 = vmax.f32 %v78, %v79
    %188 = vmax.xlane.f32.xlu0 %v187
    %v189 = vpop.xlane.xlu0 %188
    %v190 = vmax.f32 %v80, %v81
    %191 = vmax.xlane.f32.xlu0 %v190
    %v192 = vpop.xlane.xlu0 %191
    %v193 = vmax.f32 %v82, %v83
    %194 = vmax.xlane.f32.xlu0 %v193
    %v195 = vpop.xlane.xlu0 %194
    %v212 = vlaneseq
    %v213 = vand.u32 %v212, 127
    %v214 = vlaneseq
    %v215 = vshrl.u32 %v214, 7
    %v216 = vsub.s32 %v213, %v215
    %v217 = vrot.slane %v132, %v216
    %v218 = vadd.s32 %v213, 4294967288
    %v219 = vlaneseq
    %v220 = vshrl.u32 %v219, 7
    %v221 = vsub.s32 %v218, %v220
    %v222 = vrot.slane %v133, %v221
    %vm223 = vcmask 130112
    %v224 = vsel %vm223, %v222, %v217
    %v225 = vadd.s32 %v213, 4294967280
    %v226 = vlaneseq
    %v227 = vshrl.u32 %v226, 7
    %v228 = vsub.s32 %v225, %v227
    %v229 = vrot.slane %v134, %v228
    %vm230 = vcmask 195712
    %v231 = vsel %vm230, %v229, %v224
    %v232 = vadd.s32 %v213, 4294967272
    %v233 = vlaneseq
    %v234 = vshrl.u32 %v233, 7
    %v235 = vsub.s32 %v232, %v234
    %v236 = vrot.slane %v135, %v235
    %vm237 = vcmask 261312
    %v238 = vsel %vm237, %v236, %v231
    %v239 = vadd.s32 %v213, 4294967264
    %v240 = vlaneseq
    %v241 = vshrl.u32 %v240, 7
    %v242 = vsub.s32 %v239, %v241
    %v243 = vrot.slane %v136, %v242
    %vm244 = vcmask 326912
    %v245 = vsel %vm244, %v243, %v238
    %v246 = vadd.s32 %v213, 4294967256
    %v247 = vlaneseq
    %v248 = vshrl.u32 %v247, 7
    %v249 = vsub.s32 %v246, %v248
    %v250 = vrot.slane %v137, %v249
    %vm251 = vcmask 392512
    %v252 = vsel %vm251, %v250, %v245
    %v253 = vadd.s32 %v213, 4294967248
    %v254 = vlaneseq
    %v255 = vshrl.u32 %v254, 7
    %v256 = vsub.s32 %v253, %v255
    %v257 = vrot.slane %v138, %v256
    %vm258 = vcmask 458112
    %v259 = vsel %vm258, %v257, %v252
    %v260 = vadd.s32 %v213, 4294967240
    %v261 = vlaneseq
    %v262 = vshrl.u32 %v261, 7
    %v263 = vsub.s32 %v260, %v262
    %v264 = vrot.slane %v139, %v263
    %vm265 = vcmask 523712
    %v266 = vsel %vm265, %v264, %v259
    %v267 = vlaneseq
    %v268 = vshrl.u32 %v267, 7
    %v269 = vsub.s32 %v213, %v268
    %v270 = vrot.slane %v140, %v269
    %v271 = vlaneseq
    %v272 = vshrl.u32 %v271, 7
    %v273 = vsub.s32 %v218, %v272
    %v274 = vrot.slane %v141, %v273
    %v275 = vsel %vm223, %v274, %v270
    %v276 = vlaneseq
    %v277 = vshrl.u32 %v276, 7
    %v278 = vsub.s32 %v225, %v277
    %v279 = vrot.slane %v142, %v278
    %v280 = vsel %vm230, %v279, %v275
    %v281 = vlaneseq
    %v282 = vshrl.u32 %v281, 7
    %v283 = vsub.s32 %v232, %v282
    %v284 = vrot.slane %v143, %v283
    %v285 = vsel %vm237, %v284, %v280
    %v286 = vlaneseq
    %v287 = vshrl.u32 %v286, 7
    %v288 = vsub.s32 %v239, %v287
    %v289 = vrot.slane %v144, %v288
    %v290 = vsel %vm244, %v289, %v285
    %v291 = vlaneseq
    %v292 = vshrl.u32 %v291, 7
    %v293 = vsub.s32 %v246, %v292
    %v294 = vrot.slane %v145, %v293
    %v295 = vsel %vm251, %v294, %v290
    %v296 = vlaneseq
    %v297 = vshrl.u32 %v296, 7
    %v298 = vsub.s32 %v253, %v297
    %v299 = vrot.slane %v146, %v298
    %v300 = vsel %vm258, %v299, %v295
    %v301 = vlaneseq
    %v302 = vshrl.u32 %v301, 7
    %v303 = vsub.s32 %v260, %v302
    %v304 = vrot.slane %v147, %v303
    %v305 = vsel %vm265, %v304, %v300
    %vm306 = vcmask 1041409
    %v307 = vsel %vm306, %v305, %v266
    %v325 = vlaneseq
    %v326 = vshrl.u32 %v325, 7
    %v327 = vsub.s32 %v213, %v326
    %v328 = vrot.slane %v150, %v327
    %v329 = vlaneseq
    %v330 = vshrl.u32 %v329, 7
    %v331 = vsub.s32 %v218, %v330
    %v332 = vrot.slane %v153, %v331
    %v333 = vsel %vm223, %v332, %v328
    %v334 = vlaneseq
    %v335 = vshrl.u32 %v334, 7
    %v336 = vsub.s32 %v225, %v335
    %v337 = vrot.slane %v156, %v336
    %v338 = vsel %vm230, %v337, %v333
    %v339 = vlaneseq
    %v340 = vshrl.u32 %v339, 7
    %v341 = vsub.s32 %v232, %v340
    %v342 = vrot.slane %v159, %v341
    %v343 = vsel %vm237, %v342, %v338
    %v344 = vlaneseq
    %v345 = vshrl.u32 %v344, 7
    %v346 = vsub.s32 %v239, %v345
    %v347 = vrot.slane %v162, %v346
    %v348 = vsel %vm244, %v347, %v343
    %v349 = vlaneseq
    %v350 = vshrl.u32 %v349, 7
    %v351 = vsub.s32 %v246, %v350
    %v352 = vrot.slane %v165, %v351
    %v353 = vsel %vm251, %v352, %v348
    %v354 = vlaneseq
    %v355 = vshrl.u32 %v354, 7
    %v356 = vsub.s32 %v253, %v355
    %v357 = vrot.slane %v168, %v356
    %v358 = vsel %vm258, %v357, %v353
    %v359 = vlaneseq
    %v360 = vshrl.u32 %v359, 7
    %v361 = vsub.s32 %v260, %v360
    %v362 = vrot.slane %v171, %v361
    %v363 = vsel %vm265, %v362, %v358
    %v364 = vlaneseq
    %v365 = vshrl.u32 %v364, 7
    %v366 = vsub.s32 %v213, %v365
    %v367 = vrot.slane %v174, %v366
    %v368 = vlaneseq
    %v369 = vshrl.u32 %v368, 7
    %v370 = vsub.s32 %v218, %v369
    %v371 = vrot.slane %v177, %v370
    %v372 = vsel %vm223, %v371, %v367
    %v373 = vlaneseq
    %v374 = vshrl.u32 %v373, 7
    %v375 = vsub.s32 %v225, %v374
    %v376 = vrot.slane %v180, %v375
    %v377 = vsel %vm230, %v376, %v372
    %v378 = vlaneseq
    %v379 = vshrl.u32 %v378, 7
    %v380 = vsub.s32 %v232, %v379
    %v381 = vrot.slane %v183, %v380
    %v382 = vsel %vm237, %v381, %v377
    %v383 = vlaneseq
    %v384 = vshrl.u32 %v383, 7
    %v385 = vsub.s32 %v239, %v384
    %v386 = vrot.slane %v186, %v385
    %v387 = vsel %vm244, %v386, %v382
    %v388 = vlaneseq
    %v389 = vshrl.u32 %v388, 7
    %v390 = vsub.s32 %v246, %v389
    %v391 = vrot.slane %v189, %v390
    %v392 = vsel %vm251, %v391, %v387
    %v393 = vlaneseq
    %v394 = vshrl.u32 %v393, 7
    %v395 = vsub.s32 %v253, %v394
    %v396 = vrot.slane %v192, %v395
    %v397 = vsel %vm258, %v396, %v392
    %v398 = vlaneseq
    %v399 = vshrl.u32 %v398, 7
    %v400 = vsub.s32 %v260, %v399
    %v401 = vrot.slane %v195, %v400
    %v402 = vsel %vm265, %v401, %v397
    %vm403 = vcmask 1043459
    %v404 = vsel %vm403, %v402, %v363
    %vm406 = vcmask 1041408
    %v407 = vsel %vm406, %v307, %v404
    %v408 = vld [vmem:[%s2] sm:$0xf]
    %v409 = vld [vmem:[%s3] sm:$0x1]
    %v411 = vlaneseq
    %v412 = vshrl.u32 %v411, 7
    %v413 = vsub.s32 0, %v412
    %v414 = vrot.slane %v409, %v413
    %vm416 = vcmask 523264
    %v418 = vsel %vm416, %v407, 0
    %v421 = vsel %vm416, %v408, 0
    %423 = vmatprep.subr.mxu0 0.0
    %424 = vmatpush1.xpose.msra.mxu0 %v421
    %425 = vmatprep.subr.mxu0 0.0
    %426 = vmatpush1.xpose.msra.mxu0 0.0
    %427 = vmatprep.subr.mxu0 0.0
    %428 = vmatpush1.xpose.msra.mxu0 0.0
    %429 = vmatprep.subr.mxu0 0.0
    %430 = vmatpush1.xpose.msra.mxu0 0.0
    %431 = vmatprep.subr.mxu0 0.0
    %432 = vmatpush1.xpose.msra.mxu0 0.0
    %433 = vmatprep.subr.mxu0 0.0
    %434 = vmatpush1.xpose.msra.mxu0 0.0
    %435 = vmatprep.subr.mxu0 0.0
    %436 = vmatpush1.xpose.msra.mxu0 0.0
    %437 = vmatprep.subr.mxu0 0.0
    %438 = vmatpush1.xpose.msra.mxu0 0.0
    %439 = vmatprep.subr.mxu0 0.0
    %440 = vmatpush1.xpose.msra.mxu0 0.0
    %441 = vmatprep.subr.mxu0 0.0
    %442 = vmatpush1.xpose.msra.mxu0 0.0
    %443 = vmatprep.subr.mxu0 0.0
    %444 = vmatpush1.xpose.msra.mxu0 0.0
    %445 = vmatprep.subr.mxu0 0.0
    %446 = vmatpush1.xpose.msra.mxu0 0.0
    %447 = vmatprep.subr.mxu0 0.0
    %448 = vmatpush1.xpose.msra.mxu0 0.0
    %449 = vmatprep.subr.mxu0 0.0
    %450 = vmatpush1.xpose.msra.mxu0 0.0
    %451 = vmatprep.subr.mxu0 0.0
    %452 = vmatpush1.xpose.msra.mxu0 0.0
    %453 = vmatprep.subr.mxu0 0.0
    %454 = vmatpush1.xpose.msra.mxu0 0.0
    %455 = vmatprep.subr.mxu0 0.0
    %456 = vmatpush1.xpose.msra.mxu0 0.0
    %457 = vmatprep.subr.mxu0 0.0
    %458 = vmatpush1.xpose.msra.mxu0 0.0
    %459 = vmatprep.subr.mxu0 0.0
    %460 = vmatpush1.xpose.msra.mxu0 0.0
    %461 = vmatprep.subr.mxu0 0.0
    %462 = vmatpush1.xpose.msra.mxu0 0.0
    %463 = vmatprep.subr.mxu0 0.0
    %464 = vmatpush1.xpose.msra.mxu0 0.0
    %465 = vmatprep.subr.mxu0 0.0
    %466 = vmatpush1.xpose.msra.mxu0 0.0
    %467 = vmatprep.subr.mxu0 0.0
    %468 = vmatpush1.xpose.msra.mxu0 0.0
    %469 = vmatprep.subr.mxu0 0.0
    %470 = vmatpush1.xpose.msra.mxu0 0.0
    %471 = vmatprep.subr.mxu0 0.0
    %472 = vmatpush1.xpose.msra.mxu0 0.0
    %473 = vmatprep.subr.mxu0 0.0
    %474 = vmatpush1.xpose.msra.mxu0 0.0
    %475 = vmatprep.subr.mxu0 0.0
    %476 = vmatpush1.xpose.msra.mxu0 0.0
    %477 = vmatprep.subr.mxu0 0.0
    %478 = vmatpush1.xpose.msra.mxu0 0.0
    %479 = vmatprep.subr.mxu0 0.0
    %480 = vmatpush1.xpose.msra.mxu0 0.0
    %481 = vmatprep.subr.mxu0 0.0
    %482 = vmatpush1.xpose.msra.mxu0 0.0
    %483 = vmatprep.subr.mxu0 0.0
    %484 = vmatpush1.xpose.msra.mxu0 0.0
    %485 = vmatprep.subr.mxu0 0.0
    %486 = vmatpush1.xpose.msra.mxu0 0.0
    %487 = vmatprep.mubr.f32.mxu0 0.0
    %488 = vmatmul.mubr.f32.gmra.mrb[0].mxu0 %v418
    %v489 = vpop.f32.mrb[0].mxu0
    %v490 = vadd.f32 %v414, %v489
    %v491 = vpop.f32.mrb[0].mxu0
    %492 = vdwg.mxu0
    %v493 = vmax.f32 %v490, 0.0
    %v495 = vrot.slane %v493, 2
    %v497 = vadd.f32 %v493, %v495
    %v498 = vld [vmem:[%s4] sm:$0xff]
    %v499 = vld [vmem:[%s4 + $0x8] sm:$0xff]
    %v500 = vld [vmem:[%s4 + $0x10] sm:$0xff]
    %v501 = vld [vmem:[%s4 + $0x18] sm:$0xff]
    %v502 = vld [vmem:[%s4 + $0x20] sm:$0xff]
    %v503 = vld [vmem:[%s4 + $0x28] sm:$0xff]
    %v504 = vld [vmem:[%s4 + $0x30] sm:$0xff]
    %v505 = vld [vmem:[%s4 + $0x38] sm:$0xff]
    %v506 = vld [vmem:[%s5] sm:$0x1]
    %v507 = vmul.f32 %v506, 2.0
    %v509 = vlaneseq
    %v510 = vshrl.u32 %v509, 7
    %v511 = vsub.s32 0, %v510
    %v512 = vrot.slane %v507, %v511
    %vm514 = vcmask 31744
    %v516 = vsel %vm514, %v497, 0
    %v519 = vsel %vm514, %v498, 0
    %v522 = vsel %vm514, %v499, 0
    %v525 = vsel %vm514, %v500, 0
    %v528 = vsel %vm514, %v501, 0
    %v531 = vsel %vm514, %v502, 0
    %v534 = vsel %vm514, %v503, 0
    %v537 = vsel %vm514, %v504, 0
    %v540 = vsel %vm514, %v505, 0
    %542 = vmatprep.subr.mxu0 0.0
    %543 = vmatpush1.xpose.msra.mxu0 %v519
    %544 = vmatprep.subr.mxu0 0.0
    %545 = vmatpush1.xpose.msra.mxu0 %v522
    %546 = vmatprep.subr.mxu0 0.0
    %547 = vmatpush1.xpose.msra.mxu0 %v525
    %548 = vmatprep.subr.mxu0 0.0
    %549 = vmatpush1.xpose.msra.mxu0 %v528
    %550 = vmatprep.subr.mxu0 0.0
    %551 = vmatpush1.xpose.msra.mxu0 %v531
    %552 = vmatprep.subr.mxu0 0.0
    %553 = vmatpush1.xpose.msra.mxu0 %v534
    %554 = vmatprep.subr.mxu0 0.0
    %555 = vmatpush1.xpose.msra.mxu0 %v537
    %556 = vmatprep.subr.mxu0 0.0
    %557 = vmatpush1.xpose.msra.mxu0 %v540
    %558 = vmatprep.subr.mxu0 0.0
    %559 = vmatpush1.xpose.msra.mxu0 0.0
    %560 = vmatprep.subr.mxu0 0.0
    %561 = vmatpush1.xpose.msra.mxu0 0.0
    %562 = vmatprep.subr.mxu0 0.0
    %563 = vmatpush1.xpose.msra.mxu0 0.0
    %564 = vmatprep.subr.mxu0 0.0
    %565 = vmatpush1.xpose.msra.mxu0 0.0
    %566 = vmatprep.subr.mxu0 0.0
    %567 = vmatpush1.xpose.msra.mxu0 0.0
    %568 = vmatprep.subr.mxu0 0.0
    %569 = vmatpush1.xpose.msra.mxu0 0.0
    %570 = vmatprep.subr.mxu0 0.0
    %571 = vmatpush1.xpose.msra.mxu0 0.0
    %572 = vmatprep.subr.mxu0 0.0
    %573 = vmatpush1.xpose.msra.mxu0 0.0
    %574 = vmatprep.subr.mxu0 0.0
    %575 = vmatpush1.xpose.msra.mxu0 0.0
    %576 = vmatprep.subr.mxu0 0.0
    %577 = vmatpush1.xpose.msra.mxu0 0.0
    %578 = vmatprep.subr.mxu0 0.0
    %579 = vmatpush1.xpose.msra.mxu0 0.0
    %580 = vmatprep.subr.mxu0 0.0
    %581 = vmatpush1.xpose.msra.mxu0 0.0
    %582 = vmatprep.subr.mxu0 0.0
    %583 = vmatpush1.xpose.msra.mxu0 0.0
    %584 = vmatprep.subr.mxu0 0.0
    %585 = vmatpush1.xpose.msra.mxu0 0.0
    %586 = vmatprep.subr.mxu0 0.0
    %587 = vmatpush1.xpose.msra.mxu0 0.0
    %588 = vmatprep.subr.mxu0 0.0
    %589 = vmatpush1.xpose.msra.mxu0 0.0
    %590 = vmatprep.subr.mxu0 0.0
    %591 = vmatpush1.xpose.msra.mxu0 0.0
    %592 = vmatprep.subr.mxu0 0.0
    %593 = vmatpush1.xpose.msra.mxu0 0.0
    %594 = vmatprep.subr.mxu0 0.0
    %595 = vmatpush1.xpose.msra.mxu0 0.0
    %596 = vmatprep.subr.mxu0 0.0
    %597 = vmatpush1.xpose.msra.mxu0 0.0
    %598 = vmatprep.subr.mxu0 0.0
    %599 = vmatpush1.xpose.msra.mxu0 0.0
    %600 = vmatprep.subr.mxu0 0.0
    %601 = vmatpush1.xpose.msra.mxu0 0.0
    %602 = vmatprep.subr.mxu0 0.0
    %603 = vmatpush1.xpose.msra.mxu0 0.0
    %604 = vmatprep.subr.mxu0 0.0
    %605 = vmatpush1.xpose.msra.mxu0 0.0
    %606 = vmatprep.mubr.f32.mxu0 0.0
    %607 = vmatmul.mubr.f32.gmra.mrb[0].mxu0 %v516
    %v608 = vpop.f32.mrb[0].mxu0
    %v609 = vadd.f32 %v512, %v608
    %v610 = vpop.f32.mrb[0].mxu0
    %611 = vdwg.mxu0
    %v612 = vxor.u32 %v609, 2147483648
    %v613 = vmul.f32 %v612, 1.442695
    %v614 = vpow.pop %v613
    %v615 = vadd.f32 %v614, 1.0
    %v616 = vrcp.pop %v615
    %v617 = vmul.f32 1.0, %v616
    %v618 = vld [vmem:[#allocation5] sm:$0xff]
    %v619 = vld [vmem:[#allocation5 + $0x8] sm:$0xff]
    %v620 = vld [vmem:[#allocation5 + $0x10] sm:$0xff]
    %v621 = vld [vmem:[#allocation5 + $0x18] sm:$0xff]
    %v622 = vld [vmem:[#allocation5 + $0x20] sm:$0xff]
    %v623 = vld [vmem:[#allocation5 + $0x28] sm:$0xff]
    %v624 = vld [vmem:[#allocation5 + $0x30] sm:$0xff]
    %v625 = vld [vmem:[#allocation5 + $0x38] sm:$0xff]
    %v626 = vld [vmem:[#allocation5 + $0x40] sm:$0xff]
    %v627 = vld [vmem:[#allocation5 + $0x48] sm:$0xff]
    %v628 = vld [vmem:[#allocation5 + $0x50] sm:$0xff]
    %v629 = vld [vmem:[#allocation5 + $0x58] sm:$0xff]
    %v630 = vld [vmem:[#allocation5 + $0x60] sm:$0xff]
    %v631 = vld [vmem:[#allocation5 + $0x68] sm:$0xff]
    %v632 = vld [vmem:[#allocation5 + $0x70] sm:$0xff]
    %v633 = vld [vmem:[#allocation5 + $0x78] sm:$0xff]
    %v634 = vld [vmem:[#allocation5 + $0x80] sm:$0xff]
    %v635 = vld [vmem:[#allocation5 + $0x88] sm:$0xff]
    %v636 = vld [vmem:[#allocation5 + $0x90] sm:$0xff]
    %v637 = vld [vmem:[#allocation5 + $0x98] sm:$0xff]
    %v638 = vld [vmem:[#allocation5 + $0xa0] sm:$0xff]
    %v639 = vld [vmem:[#allocation5 + $0xa8] sm:$0xff]
    %v640 = vld [vmem:[#allocation5 + $0xb0] sm:$0xff]
    %v641 = vld [vmem:[#allocation5 + $0xb8] sm:$0xff]
    %v642 = vld [vmem:[#allocation5 + $0xc0] sm:$0xff]
    %v643 = vld [vmem:[#allocation5 + $0xc8] sm:$0xff]
    %v644 = vld [vmem:[#allocation5 + $0xd0] sm:$0xff]
    %v645 = vld [vmem:[#allocation5 + $0xd8] sm:$0xff]
    %v646 = vld [vmem:[#allocation5 + $0xe0] sm:$0xff]
    %v647 = vld [vmem:[#allocation5 + $0xe8] sm:$0xff]
    %v648 = vld [vmem:[#allocation5 + $0xf0] sm:$0xff]
    %v649 = vld [vmem:[#allocation5 + $0xf8] sm:$0xff]
    %v650 = vlaneseq
    %v651 = vshrl.u32 %v650, 7
    %v652 = vsub.s32 0, %v651
    %v653 = vrot.slane %v617, %v652
    %655 = vbcast.lane.b32.xlu0 %v653, 256
    %v656 = vpop.permute.xlu0 %655
    %s658 = sor.u32 256, 8
    %659 = vbcast.lane.b32.xlu0 %v653, %s658
    %v660 = vpop.permute.xlu0 %659
    %s662 = sor.u32 256, 16
    %663 = vbcast.lane.b32.xlu0 %v653, %s662
    %v664 = vpop.permute.xlu0 %663
    %s666 = sor.u32 256, 24
    %667 = vbcast.lane.b32.xlu0 %v653, %s666
    %v668 = vpop.permute.xlu0 %667
    %s670 = sor.u32 256, 32
    %671 = vbcast.lane.b32.xlu0 %v653, %s670
    %v672 = vpop.permute.xlu0 %671
    %s674 = sor.u32 256, 40
    %675 = vbcast.lane.b32.xlu0 %v653, %s674
    %v676 = vpop.permute.xlu0 %675
    %s678 = sor.u32 256, 48
    %679 = vbcast.lane.b32.xlu0 %v653, %s678
    %v680 = vpop.permute.xlu0 %679
    %s682 = sor.u32 256, 56
    %683 = vbcast.lane.b32.xlu0 %v653, %s682
    %v684 = vpop.permute.xlu0 %683
    %v685 = vlaneseq
    %v686 = vshrl.u32 %v685, 7
    %v687 = vsub.s32 1, %v686
    %v688 = vrot.slane %v617, %v687
    %690 = vbcast.lane.b32.xlu0 %v688, 256
    %v691 = vpop.permute.xlu0 %690
    %s693 = sor.u32 256, 8
    %694 = vbcast.lane.b32.xlu0 %v688, %s693
    %v695 = vpop.permute.xlu0 %694
    %s697 = sor.u32 256, 16
    %698 = vbcast.lane.b32.xlu0 %v688, %s697
    %v699 = vpop.permute.xlu0 %698
    %s701 = sor.u32 256, 24
    %702 = vbcast.lane.b32.xlu0 %v688, %s701
    %v703 = vpop.permute.xlu0 %702
    %s705 = sor.u32 256, 32
    %706 = vbcast.lane.b32.xlu0 %v688, %s705
    %v707 = vpop.permute.xlu0 %706
    %s709 = sor.u32 256, 40
    %710 = vbcast.lane.b32.xlu0 %v688, %s709
    %v711 = vpop.permute.xlu0 %710
    %s713 = sor.u32 256, 48
    %714 = vbcast.lane.b32.xlu0 %v688, %s713
    %v715 = vpop.permute.xlu0 %714
    %s717 = sor.u32 256, 56
    %718 = vbcast.lane.b32.xlu0 %v688, %s717
    %v719 = vpop.permute.xlu0 %718
    %v720 = vmul.f32 %v618, %v656
    %v721 = vmul.f32 %v619, %v656
    %v722 = vmul.f32 %v620, %v660
    %v723 = vmul.f32 %v621, %v660
    %v724 = vmul.f32 %v622, %v664
    %v725 = vmul.f32 %v623, %v664
    %v726 = vmul.f32 %v624, %v668
    %v727 = vmul.f32 %v625, %v668
    %v728 = vmul.f32 %v626, %v672
    %v729 = vmul.f32 %v627, %v672
    %v730 = vmul.f32 %v628, %v676
    %v731 = vmul.f32 %v629, %v676
    %v732 = vmul.f32 %v630, %v680
    %v733 = vmul.f32 %v631, %v680
    %v734 = vmul.f32 %v632, %v684
    %v735 = vmul.f32 %v633, %v684
    %v736 = vmul.f32 %v634, %v691
    %v737 = vmul.f32 %v635, %v691
    %v738 = vmul.f32 %v636, %v695
    %v739 = vmul.f32 %v637, %v695
    %v740 = vmul.f32 %v638, %v699
    %v741 = vmul.f32 %v639, %v699
    %v742 = vmul.f32 %v640, %v703
    %v743 = vmul.f32 %v641, %v703
    %v744 = vmul.f32 %v642, %v707
    %v745 = vmul.f32 %v643, %v707
    %v746 = vmul.f32 %v644, %v711
    %v747 = vmul.f32 %v645, %v711
    %v748 = vmul.f32 %v646, %v715
    %v749 = vmul.f32 %v647, %v715
    %v750 = vmul.f32 %v648, %v719
    %v751 = vmul.f32 %v649, %v719
    %752 = vst [vmem:[#allocation7] sm:$0xff] %v720
    %753 = vst [vmem:[#allocation7 + $0x8] sm:$0xff] %v721
    %754 = vst [vmem:[#allocation7 + $0x10] sm:$0xff] %v722
    %755 = vst [vmem:[#allocation7 + $0x18] sm:$0xff] %v723
    %756 = vst [vmem:[#allocation7 + $0x20] sm:$0xff] %v724
    %757 = vst [vmem:[#allocation7 + $0x28] sm:$0xff] %v725
    %758 = vst [vmem:[#allocation7 + $0x30] sm:$0xff] %v726
    %759 = vst [vmem:[#allocation7 + $0x38] sm:$0xff] %v727
    %760 = vst [vmem:[#allocation7 + $0x40] sm:$0xff] %v728
    %761 = vst [vmem:[#allocation7 + $0x48] sm:$0xff] %v729
    %762 = vst [vmem:[#allocation7 + $0x50] sm:$0xff] %v730
    %763 = vst [vmem:[#allocation7 + $0x58] sm:$0xff] %v731
    %764 = vst [vmem:[#allocation7 + $0x60] sm:$0xff] %v732
    %765 = vst [vmem:[#allocation7 + $0x68] sm:$0xff] %v733
    %766 = vst [vmem:[#allocation7 + $0x70] sm:$0xff] %v734
    %767 = vst [vmem:[#allocation7 + $0x78] sm:$0xff] %v735
    %768 = vst [vmem:[#allocation7 + $0x80] sm:$0xff] %v736
    %769 = vst [vmem:[#allocation7 + $0x88] sm:$0xff] %v737
    %770 = vst [vmem:[#allocation7 + $0x90] sm:$0xff] %v738
    %771 = vst [vmem:[#allocation7 + $0x98] sm:$0xff] %v739
    %772 = vst [vmem:[#allocation7 + $0xa0] sm:$0xff] %v740
    %773 = vst [vmem:[#allocation7 + $0xa8] sm:$0xff] %v741
    %774 = vst [vmem:[#allocation7 + $0xb0] sm:$0xff] %v742
    %775 = vst [vmem:[#allocation7 + $0xb8] sm:$0xff] %v743
    %776 = vst [vmem:[#allocation7 + $0xc0] sm:$0xff] %v744
    %777 = vst [vmem:[#allocation7 + $0xc8] sm:$0xff] %v745
    %778 = vst [vmem:[#allocation7 + $0xd0] sm:$0xff] %v746
    %779 = vst [vmem:[#allocation7 + $0xd8] sm:$0xff] %v747
    %780 = vst [vmem:[#allocation7 + $0xe0] sm:$0xff] %v748
    %781 = vst [vmem:[#allocation7 + $0xe8] sm:$0xff] %v749
    %782 = vst [vmem:[#allocation7 + $0xf0] sm:$0xff] %v750
    %783 = vst [vmem:[#allocation7 + $0xf8] sm:$0xff] %v751
    // Predicated region
    $region34: #{tpu_custom_call.1} parent=1 // pred_check
      _
    $region35: #{tpu_custom_call.1} parent=1 // pred_check_branch
      %785 = sbr.rel (0) target = $region37
    $region36: #{tpu_custom_call.1} parent=1 // pred_region
      %s787 = ssub.s32 4096, 4096
      %788 = vsyncadd [#allocation4], %s787
      %s789 = sshll.u32 [#allocation7], 4
      %s790 = int_to_ptr.vmem [resolvable:$true] %s789
      %795 = dma.vmem_to_hbm [thread:$0]  %s790, 4096, %s6, [#allocation4], 256, 256, 16
    $region37: #{tpu_custom_call.1} parent=1 // pred_fallthru
      _
    // Predicated region
    $region38: #{tpu_custom_call.1} parent=1 // pred_check
      _
    $region39: #{tpu_custom_call.1} parent=1 // pred_check_branch
      %797 = sbr.rel (0) target = $region41
    $region40: #{tpu_custom_call.1} parent=1 // pred_region
      %798 = dma.done [#allocation4], 4096
    $region41: #{tpu_custom_call.1} parent=1 // pred_fallthru
      _
    %799 = vsyncpa [#allocation3], 1
    %800 = vsyncpa [#allocation6], 1
    %801 = vsyncpa [#allocation4], 1

</llo_original>
